<compile_context>
chip_gen: v7x
topology: tpu7x:2x2x1
jax: 0.10.0
libtpu: 0.0.40
codegen_flags: <defaults>
</compile_context>

<pallas_src>
import functools

import jax
import jax.numpy as jnp
from jax.experimental import pallas as pl
from jax.experimental.pallas import tpu as pltpu

_LANE = 128


def _round_up(v, m):
    return (v + m - 1) // m * m


def _resnet_kernel(n_layers, bias_slices, x_ref, *refs):
    """refs = (w_0, ..., w_{L-1}, bias_cat_ref, out_ref)."""
    out_ref = refs[-1]
    bias_ref = refs[-2]
    w_refs = refs[:-2]

    # bf16 operands for the MXU; f32 accumulation via preferred_element_type.
    h = x_ref[...].astype(jnp.bfloat16)
    for i in range(n_layers):
        off, width = bias_slices[i]
        w = w_refs[i][...]                      # (in_p, out_p) bf16
        b = bias_ref[:, off:off + width]        # (1, out_p) f32, static lane-aligned slice
        acc = jnp.dot(h, w, preferred_element_type=jnp.float32) + b
        if i < n_layers - 1:
            # Downcast before the ReLU (commutes with max-0): bf16 VALU path.
            h = jnp.maximum(acc.astype(jnp.bfloat16), 0.0)
        else:
            h = acc                              # final increment kept in f32
    # Residual epilogue: re-read x from VMEM instead of keeping a (tb, Dp)
    # f32 value live across every matmul (no vreg-file pressure / spills).
    out_ref[...] = (x_ref[...] + h).astype(out_ref.dtype)


def _select_batch_tiling(batch, batch_tile):
    """Pick (tile_rows, padded_batch, n_tiles) with bounded padding waste."""
    rb = _round_up(batch, 8)
    tb = min(batch_tile, rb)
    n_tiles = -(-rb // tb)
    if n_tiles == 1 and rb >= 512:
        # v7x has 2 TensorCores: give the "parallel" batch axis >= 2 steps.
        n_tiles = 2
    # Re-balance so padding waste stays below one tile and tiles are ~equal.
    tb = _round_up(-(-rb // n_tiles), 8)
    return tb, n_tiles * tb, n_tiles


def resnet_forward(x, weights, biases, *, batch_tile=512):
    """x: (batch, dim) f32; weights[i]: (arch[i], arch[i+1]); biases[i]: (1, arch[i+1])."""
    n_layers = len(weights)
    assert len(biases) == n_layers
    batch, dim = x.shape
    dims = [w.shape[0] for w in weights] + [weights[-1].shape[1]]
    assert dims[0] == dim and dims[-1] == dim  # arch[0] == arch[-1]

    # --- pad feature dims to lane multiples; weights -> bf16; biases concat ---
    pdims = [_round_up(d, _LANE) for d in dims]
    padded_weights, bias_chunks, bias_slices = [], [], []
    off = 0
    for i, (w, b) in enumerate(zip(weights, biases)):
        in_p, out_p = pdims[i], pdims[i + 1]
        wp = jnp.zeros((in_p, out_p), jnp.bfloat16)
        wp = wp.at[: w.shape[0], : w.shape[1]].set(w.astype(jnp.bfloat16))
        padded_weights.append(wp)
        bp = jnp.zeros((1, out_p), jnp.float32)
        bp = bp.at[:, : b.shape[-1]].set(b.reshape(1, -1).astype(jnp.float32))
        bias_chunks.append(bp)
        bias_slices.append((off, out_p))
        off += out_p
    bias_cat = jnp.concatenate(bias_chunks, axis=1)  # (1, sum(out_p)) f32

    # --- batch tiling ---
    tb, pbatch, n_tiles = _select_batch_tiling(batch, batch_tile)
    d_in_p, d_out_p = pdims[0], pdims[-1]
    xp = jnp.zeros((pbatch, d_in_p), jnp.float32)
    xp = xp.at[:batch, :dim].set(x.astype(jnp.float32))

    kernel = functools.partial(_resnet_kernel, n_layers, tuple(bias_slices))

    # --- VMEM budget & cost estimate (padded shapes) ---
    param_bytes = sum(int(w.size) * 2 for w in padded_weights) + int(bias_cat.size) * 4
    io_bytes = 2 * tb * (d_in_p + d_out_p) * 4          # double-buffered x / out tiles
    act_bytes = sum(tb * pdims[i + 1] * 6 for i in range(n_layers))  # f32 acc + bf16 copy
    flops = 2 * pbatch * sum(pdims[i] * pdims[i + 1] for i in range(n_layers))
    bytes_accessed = param_bytes + pbatch * (d_in_p + d_out_p) * 4

    def _build_and_run(single_buffer_params):
        def param_spec(shape):
            if single_buffer_params:
                # Pinned params are DMA'd once -> single-buffer them.
                return pl.BlockSpec(shape, lambda i: (0, 0),
                                    pipeline_mode=pl.Buffered(1))
            return pl.BlockSpec(shape, lambda i: (0, 0))

        in_specs = [pl.BlockSpec((tb, d_in_p), lambda i: (i, 0))]
        for li in range(n_layers):
            in_specs.append(param_spec((pdims[li], pdims[li + 1])))
        in_specs.append(param_spec((1, bias_cat.shape[1])))
        out_specs = pl.BlockSpec((tb, d_out_p), lambda i: (i, 0))

        nbuf = 1 if single_buffer_params else 2
        required = param_bytes * nbuf + io_bytes + act_bytes
        # Clamp to 64 MiB: safe on every generation (v7x physical VMEM per TC).
        vmem_limit = int(min(64 << 20, max(2 * required + (2 << 20), 16 << 20)))

        out = pl.pallas_call(
            kernel,
            out_shape=jax.ShapeDtypeStruct((pbatch, d_out_p), x.dtype),
            grid=(n_tiles,),
            in_specs=in_specs,
            out_specs=out_specs,
            compiler_params=pltpu.CompilerParams(
                dimension_semantics=("parallel",),
                vmem_limit_bytes=vmem_limit,
            ),
            cost_estimate=pl.CostEstimate(
                flops=flops, transcendentals=0, bytes_accessed=bytes_accessed
            ),
        )(xp, *padded_weights, bias_cat)
        return jax.block_until_ready(out)

    try:
        out_padded = _build_and_run(True)
    except Exception:
        # Fallback: default (double-buffered) parameter pipelining.
        out_padded = _build_and_run(False)

    # slice back to the real batch / feature extent
    return out_padded[:batch, :dim]


def init_params(arch, key):
    """Deterministic init mimicking torch.nn.Linear (U(-1/sqrt(fan_in), 1/sqrt(fan_in)))."""
    weights, biases = [], []
    for i in range(len(arch) - 1):
        fan_in, fan_out = arch[i], arch[i + 1]
        key, kw, kb = jax.random.split(key, 3)
        bound = 1.0 / jnp.sqrt(fan_in)
        # stored as (in, out) == W.T relative to torch's (out, in)
        w = jax.random.uniform(kw, (fan_in, fan_out), jnp.float32, -bound, bound)
        b = jax.random.uniform(kb, (1, fan_out), jnp.float32, -bound, bound)
        weights.append(w)
        biases.append(b)
    return weights, biases


def reference_forward(x, weights, biases):
    """Pure-JAX f32 reference of ResNet.forward for verification."""
    h = x
    n = len(weights)
    for i in range(n):
        h = h @ weights[i] + biases[i]
        if i < n - 1:
            h = jnp.maximum(h, 0.0)
    return x + h


# TODO(synk): uni_scale_forecast / train_net / calculate_loss (scipy interpolation,
# Adam training loop) are host-side utilities, not part of the forward kernel.

if __name__ == "__main__":
    # arch[0] == arch[-1] as asserted in ResNet.__init__
    arch = [32, 64, 64, 32]

    key = jax.random.PRNGKey(0)
    key, kx1, kx2 = jax.random.split(key, 3)
    weights, biases = init_params(arch, key)

    # Case 1: small batch -> single grid step (no per-step overhead, MXU M filled once).
    x_small = jax.random.normal(kx1, (24, arch[0]), jnp.float32)
    out_small = resnet_forward(x_small, weights, biases)
    ref_small = reference_forward(x_small, weights, biases)
    assert out_small.shape == x_small.shape
    # bf16 matmul operands with f32 accumulation -> relaxed tolerance vs f32 ref
    assert jnp.allclose(out_small, ref_small, atol=2e-2, rtol=2e-2), float(
        jnp.max(jnp.abs(out_small - ref_small))
    )

    # Case 2: batch not a multiple of the tile -> multi-step grid with
    # re-balanced tiles (padding waste bounded below one tile).
    x_tail = jax.random.normal(kx2, (200, arch[0]), jnp.float32)
    out_tail = resnet_forward(x_tail, weights, biases, batch_tile=64)
    ref_tail = reference_forward(x_tail, weights, biases)
    assert out_tail.shape == x_tail.shape
    assert jnp.allclose(out_tail, ref_tail, atol=2e-2, rtol=2e-2), float(
        jnp.max(jnp.abs(out_tail - ref_tail))
    )

    print("KERNEL_OK")
</pallas_src>

<mosaic_0001>
module attributes {stable_mosaic.version = 11 : i64} {
  func.func @_resnet_kernel(%arg0: i32, %arg1: memref<24x128xf32, #tpu.memory_space<vmem>>, %arg2: memref<128x128xbf16, #tpu.memory_space<vmem>>, %arg3: memref<128x128xbf16, #tpu.memory_space<vmem>>, %arg4: memref<128x128xbf16, #tpu.memory_space<vmem>>, %arg5: memref<1x384xf32, #tpu.memory_space<vmem>>, %arg6: memref<24x128xf32, #tpu.memory_space<vmem>>) attributes {dimension_semantics = [#tpu.dimension_semantics<parallel>], iteration_bounds = array<i64: 1>, scalar_prefetch = 0 : i64, scratch_operands = 0 : i64, tpu.core_type = #tpu.core_type<tc>, window_params = [{transform_indices = @transform_0, window_bounds = array<i64: 24, 128>}, {pipeline_mode = #tpu.pipeline_mode<synchronous>, transform_indices = @transform_1, window_bounds = array<i64: 128, 128>}, {pipeline_mode = #tpu.pipeline_mode<synchronous>, transform_indices = @transform_2, window_bounds = array<i64: 128, 128>}, {pipeline_mode = #tpu.pipeline_mode<synchronous>, transform_indices = @transform_3, window_bounds = array<i64: 128, 128>}, {pipeline_mode = #tpu.pipeline_mode<synchronous>, transform_indices = @transform_4, window_bounds = array<i64: 1, 384>}, {transform_indices = @transform_5, window_bounds = array<i64: 24, 128>}]} {
    %c0 = arith.constant 0 : index
    %c0_0 = arith.constant 0 : index
    %0 = vector.load %arg1[%c0, %c0_0] : memref<24x128xf32, #tpu.memory_space<vmem>>, vector<24x128xf32>
    %1 = arith.truncf %0 : vector<24x128xf32> to vector<24x128xbf16>
    %c0_1 = arith.constant 0 : index
    %c0_2 = arith.constant 0 : index
    %2 = vector.load %arg2[%c0_1, %c0_2] : memref<128x128xbf16, #tpu.memory_space<vmem>>, vector<128x128xbf16>
    %c0_3 = arith.constant 0 : index
    %c0_4 = arith.constant 0 : index
    %3 = vector.load %arg5[%c0_3, %c0_4] : memref<1x384xf32, #tpu.memory_space<vmem>>, vector<1x128xf32>
    %cst = arith.constant dense<0.000000e+00> : vector<24x128xf32>
    %4 = tpu.matmul %1, %2, %cst {dimension_numbers = #tpu.dot_dimension_numbers<[1], [0], [0], [1], [0, 0, 1, 1], [], []>} : vector<24x128xbf16>, vector<128x128xbf16>, vector<24x128xf32> -> vector<24x128xf32>
    %5 = vector.broadcast %3 : vector<1x128xf32> to vector<24x128xf32>
    %6 = arith.addf %4, %5 : vector<24x128xf32>
    %7 = arith.truncf %6 : vector<24x128xf32> to vector<24x128xbf16>
    %cst_5 = arith.constant 0.000000e+00 : bf16
    %8 = vector.broadcast %cst_5 : bf16 to vector<24x128xbf16>
    %9 = arith.maximumf %7, %8 : vector<24x128xbf16>
    %c0_6 = arith.constant 0 : index
    %c0_7 = arith.constant 0 : index
    %10 = vector.load %arg3[%c0_6, %c0_7] : memref<128x128xbf16, #tpu.memory_space<vmem>>, vector<128x128xbf16>
    %c0_8 = arith.constant 0 : index
    %c128 = arith.constant 128 : index
    %11 = vector.load %arg5[%c0_8, %c128] : memref<1x384xf32, #tpu.memory_space<vmem>>, vector<1x128xf32>
    %cst_9 = arith.constant dense<0.000000e+00> : vector<24x128xf32>
    %12 = tpu.matmul %9, %10, %cst_9 {dimension_numbers = #tpu.dot_dimension_numbers<[1], [0], [0], [1], [0, 0, 1, 1], [], []>} : vector<24x128xbf16>, vector<128x128xbf16>, vector<24x128xf32> -> vector<24x128xf32>
    %13 = vector.broadcast %11 : vector<1x128xf32> to vector<24x128xf32>
    %14 = arith.addf %12, %13 : vector<24x128xf32>
    %15 = arith.truncf %14 : vector<24x128xf32> to vector<24x128xbf16>
    %cst_10 = arith.constant 0.000000e+00 : bf16
    %16 = vector.broadcast %cst_10 : bf16 to vector<24x128xbf16>
    %17 = arith.maximumf %15, %16 : vector<24x128xbf16>
    %c0_11 = arith.constant 0 : index
    %c0_12 = arith.constant 0 : index
    %18 = vector.load %arg4[%c0_11, %c0_12] : memref<128x128xbf16, #tpu.memory_space<vmem>>, vector<128x128xbf16>
    %c0_13 = arith.constant 0 : index
    %c256 = arith.constant 256 : index
    %19 = vector.load %arg5[%c0_13, %c256] : memref<1x384xf32, #tpu.memory_space<vmem>>, vector<1x128xf32>
    %cst_14 = arith.constant dense<0.000000e+00> : vector<24x128xf32>
    %20 = tpu.matmul %17, %18, %cst_14 {dimension_numbers = #tpu.dot_dimension_numbers<[1], [0], [0], [1], [0, 0, 1, 1], [], []>} : vector<24x128xbf16>, vector<128x128xbf16>, vector<24x128xf32> -> vector<24x128xf32>
    %21 = vector.broadcast %19 : vector<1x128xf32> to vector<24x128xf32>
    %22 = arith.addf %20, %21 : vector<24x128xf32>
    %c0_15 = arith.constant 0 : index
    %c0_16 = arith.constant 0 : index
    %23 = vector.load %arg1[%c0_15, %c0_16] : memref<24x128xf32, #tpu.memory_space<vmem>>, vector<24x128xf32>
    %24 = arith.addf %23, %22 : vector<24x128xf32>
    %c0_17 = arith.constant 0 : index
    %c0_18 = arith.constant 0 : index
    %25 = vector.load %arg6[%c0_17, %c0_18] : memref<24x128xf32, #tpu.memory_space<vmem>>, vector<24x128xf32>
    tpu.vector_store %arg6[%c0_17, %c0_18], %24 {strides = array<i32>} : memref<24x128xf32, #tpu.memory_space<vmem>>, vector<24x128xf32>,
    return
  }
  func.func @transform_0(%arg0: i32) -> (i32, i32) {
    %c0_i32 = arith.constant 0 : i32
    %c0_i32_0 = arith.constant 0 : i32
    return %arg0, %c0_i32 : i32, i32
  }
  func.func @transform_1(%arg0: i32) -> (i32, i32) {
    %c0_i32 = arith.constant 0 : i32
    %c0_i32_0 = arith.constant 0 : i32
    %c0_i32_1 = arith.constant 0 : i32
    return %c0_i32, %c0_i32_0 : i32, i32
  }
  func.func @transform_2(%arg0: i32) -> (i32, i32) {
    %c0_i32 = arith.constant 0 : i32
    %c0_i32_0 = arith.constant 0 : i32
    %c0_i32_1 = arith.constant 0 : i32
    return %c0_i32, %c0_i32_0 : i32, i32
  }
  func.func @transform_3(%arg0: i32) -> (i32, i32) {
    %c0_i32 = arith.constant 0 : i32
    %c0_i32_0 = arith.constant 0 : i32
    %c0_i32_1 = arith.constant 0 : i32
    return %c0_i32, %c0_i32_0 : i32, i32
  }
  func.func @transform_4(%arg0: i32) -> (i32, i32) {
    %c0_i32 = arith.constant 0 : i32
    %c0_i32_0 = arith.constant 0 : i32
    %c0_i32_1 = arith.constant 0 : i32
    return %c0_i32, %c0_i32_0 : i32, i32
  }
  func.func @transform_5(%arg0: i32) -> (i32, i32) {
    %c0_i32 = arith.constant 0 : i32
    %c0_i32_0 = arith.constant 0 : i32
    return %arg0, %c0_i32 : i32, i32
  }
}

module attributes {stable_mosaic.version = 11 : i64} {
  func.func @_resnet_kernel(%arg0: i32, %arg1: memref<24x128xf32, #tpu.memory_space<vmem>>, %arg2: memref<128x128xbf16, #tpu.memory_space<vmem>>, %arg3: memref<128x128xbf16, #tpu.memory_space<vmem>>, %arg4: memref<128x128xbf16, #tpu.memory_space<vmem>>, %arg5: memref<1x384xf32, #tpu.memory_space<vmem>>, %arg6: memref<24x128xf32, #tpu.memory_space<vmem>>) attributes {dimension_semantics = [#tpu.dimension_semantics<parallel>], iteration_bounds = array<i64: 1>, scalar_prefetch = 0 : i64, scratch_operands = 0 : i64, tpu.core_type = #tpu.core_type<tc>, window_params = [{transform_indices = @transform_0, window_bounds = array<i64: 24, 128>}, {pipeline_mode = #tpu.pipeline_mode<synchronous>, transform_indices = @transform_1, window_bounds = array<i64: 128, 128>}, {pipeline_mode = #tpu.pipeline_mode<synchronous>, transform_indices = @transform_2, window_bounds = array<i64: 128, 128>}, {pipeline_mode = #tpu.pipeline_mode<synchronous>, transform_indices = @transform_3, window_bounds = array<i64: 128, 128>}, {pipeline_mode = #tpu.pipeline_mode<synchronous>, transform_indices = @transform_4, window_bounds = array<i64: 1, 384>}, {transform_indices = @transform_5, window_bounds = array<i64: 24, 128>}]} {
    %c0 = arith.constant 0 : index
    %c0_0 = arith.constant 0 : index
    %0 = vector.load %arg1[%c0, %c0_0] : memref<24x128xf32, #tpu.memory_space<vmem>>, vector<24x128xf32>
    %1 = arith.truncf %0 : vector<24x128xf32> to vector<24x128xbf16>
    %c0_1 = arith.constant 0 : index
    %c0_2 = arith.constant 0 : index
    %2 = vector.load %arg2[%c0_1, %c0_2] : memref<128x128xbf16, #tpu.memory_space<vmem>>, vector<128x128xbf16>
    %c0_3 = arith.constant 0 : index
    %c0_4 = arith.constant 0 : index
    %3 = vector.load %arg5[%c0_3, %c0_4] : memref<1x384xf32, #tpu.memory_space<vmem>>, vector<1x128xf32>
    %cst = arith.constant dense<0.000000e+00> : vector<24x128xf32>
    %4 = tpu.matmul %1, %2, %cst {dimension_numbers = #tpu.dot_dimension_numbers<[1], [0], [0], [1], [0, 0, 1, 1], [], []>} : vector<24x128xbf16>, vector<128x128xbf16>, vector<24x128xf32> -> vector<24x128xf32>
    %5 = vector.broadcast %3 : vector<1x128xf32> to vector<24x128xf32>
    %6 = arith.addf %4, %5 : vector<24x128xf32>
    %7 = arith.truncf %6 : vector<24x128xf32> to vector<24x128xbf16>
    %cst_5 = arith.constant 0.000000e+00 : bf16
    %8 = vector.broadcast %cst_5 : bf16 to vector<24x128xbf16>
    %9 = arith.maximumf %7, %8 : vector<24x128xbf16>
    %c0_6 = arith.constant 0 : index
    %c0_7 = arith.constant 0 : index
    %10 = vector.load %arg3[%c0_6, %c0_7] : memref<128x128xbf16, #tpu.memory_space<vmem>>, vector<128x128xbf16>
    %c0_8 = arith.constant 0 : index
    %c128 = arith.constant 128 : index
    %11 = vector.load %arg5[%c0_8, %c128] : memref<1x384xf32, #tpu.memory_space<vmem>>, vector<1x128xf32>
    %cst_9 = arith.constant dense<0.000000e+00> : vector<24x128xf32>
    %12 = tpu.matmul %9, %10, %cst_9 {dimension_numbers = #tpu.dot_dimension_numbers<[1], [0], [0], [1], [0, 0, 1, 1], [], []>} : vector<24x128xbf16>, vector<128x128xbf16>, vector<24x128xf32> -> vector<24x128xf32>
    %13 = vector.broadcast %11 : vector<1x128xf32> to vector<24x128xf32>
    %14 = arith.addf %12, %13 : vector<24x128xf32>
    %15 = arith.truncf %14 : vector<24x128xf32> to vector<24x128xbf16>
    %cst_10 = arith.constant 0.000000e+00 : bf16
    %16 = vector.broadcast %cst_10 : bf16 to vector<24x128xbf16>
    %17 = arith.maximumf %15, %16 : vector<24x128xbf16>
    %c0_11 = arith.constant 0 : index
    %c0_12 = arith.constant 0 : index
    %18 = vector.load %arg4[%c0_11, %c0_12] : memref<128x128xbf16, #tpu.memory_space<vmem>>, vector<128x128xbf16>
    %c0_13 = arith.constant 0 : index
    %c256 = arith.constant 256 : index
    %19 = vector.load %arg5[%c0_13, %c256] : memref<1x384xf32, #tpu.memory_space<vmem>>, vector<1x128xf32>
    %cst_14 = arith.constant dense<0.000000e+00> : vector<24x128xf32>
    %20 = tpu.matmul %17, %18, %cst_14 {dimension_numbers = #tpu.dot_dimension_numbers<[1], [0], [0], [1], [0, 0, 1, 1], [], []>} : vector<24x128xbf16>, vector<128x128xbf16>, vector<24x128xf32> -> vector<24x128xf32>
    %21 = vector.broadcast %19 : vector<1x128xf32> to vector<24x128xf32>
    %22 = arith.addf %20, %21 : vector<24x128xf32>
    %c0_15 = arith.constant 0 : index
    %c0_16 = arith.constant 0 : index
    %23 = vector.load %arg1[%c0_15, %c0_16] : memref<24x128xf32, #tpu.memory_space<vmem>>, vector<24x128xf32>
    %24 = arith.addf %23, %22 : vector<24x128xf32>
    %c0_17 = arith.constant 0 : index
    %c0_18 = arith.constant 0 : index
    %25 = vector.load %arg6[%c0_17, %c0_18] : memref<24x128xf32, #tpu.memory_space<vmem>>, vector<24x128xf32>
    tpu.vector_store %arg6[%c0_17, %c0_18], %24 {strides = array<i32>} : memref<24x128xf32, #tpu.memory_space<vmem>>, vector<24x128xf32>,
    return
  }
  func.func @transform_0(%arg0: i32) -> (i32, i32) {
    %c0_i32 = arith.constant 0 : i32
    %c0_i32_0 = arith.constant 0 : i32
    return %arg0, %c0_i32 : i32, i32
  }
  func.func @transform_1(%arg0: i32) -> (i32, i32) {
    %c0_i32 = arith.constant 0 : i32
    %c0_i32_0 = arith.constant 0 : i32
    %c0_i32_1 = arith.constant 0 : i32
    return %c0_i32, %c0_i32_0 : i32, i32
  }
  func.func @transform_2(%arg0: i32) -> (i32, i32) {
    %c0_i32 = arith.constant 0 : i32
    %c0_i32_0 = arith.constant 0 : i32
    %c0_i32_1 = arith.constant 0 : i32
    return %c0_i32, %c0_i32_0 : i32, i32
  }
  func.func @transform_3(%arg0: i32) -> (i32, i32) {
    %c0_i32 = arith.constant 0 : i32
    %c0_i32_0 = arith.constant 0 : i32
    %c0_i32_1 = arith.constant 0 : i32
    return %c0_i32, %c0_i32_0 : i32, i32
  }
  func.func @transform_4(%arg0: i32) -> (i32, i32) {
    %c0_i32 = arith.constant 0 : i32
    %c0_i32_0 = arith.constant 0 : i32
    %c0_i32_1 = arith.constant 0 : i32
    return %c0_i32, %c0_i32_0 : i32, i32
  }
  func.func @transform_5(%arg0: i32) -> (i32, i32) {
    %c0_i32 = arith.constant 0 : i32
    %c0_i32_0 = arith.constant 0 : i32
    return %arg0, %c0_i32 : i32, i32
  }
}

</mosaic_0001>

<llo_original>
// kernel: tpu_custom_call.1
$region0: #{tpu_custom_call.1}
  #allocation0 [shape = 'u32[]', space=smem, size = 0x4, offset = 0x4, fixed_abs, tag = 'smem constant byte address 0x4 - core index']
  #allocation1 [shape = 'u32[144,128]{1,0:T(1,128)}', space=vmem, size = 0x12000, scoped, tag = 'internal scratch']
  %s0 = inlined_call_operand.hbm [shape: f32[24,128], index: 0, kind: input, shape index: {}]
  %s1 = inlined_call_operand.hbm [shape: bf16[128,128], index: 1, kind: input, shape index: {}]
  %s2 = inlined_call_operand.hbm [shape: bf16[128,128], index: 2, kind: input, shape index: {}]
  %s3 = inlined_call_operand.hbm [shape: bf16[128,128], index: 3, kind: input, shape index: {}]
  %s4 = inlined_call_operand.vmem [shape: f32[1,384], index: 4, kind: input, shape index: {}]
  %s5 = inlined_call_operand.hbm [shape: f32[24,128], index: 5, kind: output, shape index: {}]
  %s6 = sld [smem:[#allocation0]]
  $region46: #{tpu_custom_call.1} parent=0
    _
  %s8 = ssub.s32 1, %s6
  %s9 = scalar_select 0, %s8, %s6
  $region1: #{tpu_custom_call.1} parent=0
    #allocation2 [shape = 'u8[12288]{0}', space=vmem, size = 0x3000, scoped, tag = 'input window, operand 0, single buffered']
    #allocation3 [shape = 's32[1]{0}', space=sflag, size = 0x4, scoped, tag = 'scoped memory for tpu_custom_call.1']
    #allocation4 [shape = 's32[1]{0}', space=sflag, size = 0x4, scoped, tag = 'scoped memory for tpu_custom_call.1']
    #allocation5 [shape = 'u8[32768]{0}', space=vmem, size = 0x8000, scoped, tag = 'input window, operand 1, single buffered']
    #allocation6 [shape = 's32[1]{0}', space=sflag, size = 0x4, scoped, tag = 'scoped memory for tpu_custom_call.1']
    #allocation7 [shape = 'u8[32768]{0}', space=vmem, size = 0x8000, scoped, tag = 'input window, operand 2, single buffered']
    #allocation8 [shape = 'u8[32768]{0}', space=vmem, size = 0x8000, scoped, tag = 'input window, operand 3, single buffered']
    #allocation9 [shape = 's32[1]{0}', space=sflag, size = 0x4, scoped, tag = 'scoped memory for tpu_custom_call.1']
    #allocation10 [shape = 'u8[12288]{0}', space=vmem, size = 0x3000, scoped, tag = 'output window, operand 0, single buffered']
    %10 = vsyncpa [#allocation3], 0
    %11 = vsyncpa [#allocation6], 0
    %12 = vsyncpa [#allocation9], 0
    %13 = vsyncpa [#allocation4], 0
    // Predicated region
    $region2: #{tpu_custom_call.1} parent=1 // pred_check
      _
    $region3: #{tpu_custom_call.1} parent=1 // pred_check_branch
      %15 = sbr.rel (0) target = $region5
    $region4: #{tpu_custom_call.1} parent=1 // pred_region
      %s17 = ssub.s32 384, 384
      %18 = vsyncadd [#allocation3], %s17
      %s19 = sshll.u32 [#allocation2], 4
      %s20 = int_to_ptr.vmem [resolvable:$true] %s19
      %25 = dma.hbm_to_vmem [thread:$0]  %s0, 384, %s20, [#allocation3], 128, 128, 8
    $region5: #{tpu_custom_call.1} parent=1 // pred_fallthru
      _
    // Predicated region
    $region6: #{tpu_custom_call.1} parent=1 // pred_check
      _
    $region7: #{tpu_custom_call.1} parent=1 // pred_check_branch
      %27 = sbr.rel (0) target = $region9
    $region8: #{tpu_custom_call.1} parent=1 // pred_region
      %s29 = ssub.s32 1024, 1024
      %30 = vsyncadd [#allocation6], %s29
      %s31 = sshll.u32 [#allocation5], 4
      %s32 = int_to_ptr.vmem [resolvable:$true] %s31
      %37 = dma.hbm_to_vmem [thread:$0]  %s1, 1024, %s32, [#allocation6], 64, 64, 4
    $region9: #{tpu_custom_call.1} parent=1 // pred_fallthru
      _
    // Predicated region
    $region10: #{tpu_custom_call.1} parent=1 // pred_check
      _
    $region11: #{tpu_custom_call.1} parent=1 // pred_check_branch
      %39 = sbr.rel (0) target = $region13
    $region12: #{tpu_custom_call.1} parent=1 // pred_region
      %s41 = ssub.s32 1024, 1024
      %42 = vsyncadd [#allocation6], %s41
      %s43 = sshll.u32 [#allocation7], 4
      %s44 = int_to_ptr.vmem [resolvable:$true] %s43
      %49 = dma.hbm_to_vmem [thread:$0]  %s2, 1024, %s44, [#allocation6], 64, 64, 4
    $region13: #{tpu_custom_call.1} parent=1 // pred_fallthru
      _
    // Predicated region
    $region14: #{tpu_custom_call.1} parent=1 // pred_check
      _
    $region15: #{tpu_custom_call.1} parent=1 // pred_check_branch
      %51 = sbr.rel (0) target = $region17
    $region16: #{tpu_custom_call.1} parent=1 // pred_region
      %s53 = ssub.s32 1024, 1024
      %54 = vsyncadd [#allocation9], %s53
      %s55 = sshll.u32 [#allocation8], 4
      %s56 = int_to_ptr.vmem [resolvable:$true] %s55
      %61 = dma.hbm_to_vmem [thread:$0]  %s3, 1024, %s56, [#allocation9], 64, 64, 4
    $region17: #{tpu_custom_call.1} parent=1 // pred_fallthru
      _
    // Predicated region
    $region18: #{tpu_custom_call.1} parent=1 // pred_check
      _
    $region19: #{tpu_custom_call.1} parent=1 // pred_check_branch
      %63 = sbr.rel (0) target = $region21
    $region20: #{tpu_custom_call.1} parent=1 // pred_region
      _
    $region21: #{tpu_custom_call.1} parent=1 // pred_fallthru
      _
    // Predicated region
    $region22: #{tpu_custom_call.1} parent=1 // pred_check
      _
    $region23: #{tpu_custom_call.1} parent=1 // pred_check_branch
      %65 = sbr.rel (0) target = $region25
    $region24: #{tpu_custom_call.1} parent=1 // pred_region
      %66 = dma.done [#allocation3], 384
    $region25: #{tpu_custom_call.1} parent=1 // pred_fallthru
      _
    // Predicated region
    $region26: #{tpu_custom_call.1} parent=1 // pred_check
      _
    $region27: #{tpu_custom_call.1} parent=1 // pred_check_branch
      %68 = sbr.rel (0) target = $region29
    $region28: #{tpu_custom_call.1} parent=1 // pred_region
      %69 = dma.done [#allocation6], 1024
    $region29: #{tpu_custom_call.1} parent=1 // pred_fallthru
      _
    // Predicated region
    $region30: #{tpu_custom_call.1} parent=1 // pred_check
      _
    $region31: #{tpu_custom_call.1} parent=1 // pred_check_branch
      %71 = sbr.rel (0) target = $region33
    $region32: #{tpu_custom_call.1} parent=1 // pred_region
      %72 = dma.done [#allocation6], 1024
    $region33: #{tpu_custom_call.1} parent=1 // pred_fallthru
      _
    // Predicated region
    $region34: #{tpu_custom_call.1} parent=1 // pred_check
      _
    $region35: #{tpu_custom_call.1} parent=1 // pred_check_branch
      %74 = sbr.rel (0) target = $region37
    $region36: #{tpu_custom_call.1} parent=1 // pred_region
      %75 = dma.done [#allocation9], 1024
    $region37: #{tpu_custom_call.1} parent=1 // pred_fallthru
      _
    %v77 = vld [vmem:[#allocation2] sm:$0xff]
    %v78 = vld [vmem:[#allocation2 + $0x8] sm:$0xff]
    %v79 = vld [vmem:[#allocation2 + $0x10] sm:$0xff]
    %v80 = vpack.c.bf16 %v78, %v77
    %v81 = vpack.c.bf16 %v79, %v79
    %v82 = vld [vmem:[#allocation5] sm:$0xf]
    %v83 = vld [vmem:[#allocation5 + $0x4] sm:$0xf]
    %v84 = vld [vmem:[#allocation5 + $0x8] sm:$0xf]
    %v85 = vld [vmem:[#allocation5 + $0xc] sm:$0xf]
    %v86 = vld [vmem:[#allocation5 + $0x10] sm:$0xf]
    %v87 = vld [vmem:[#allocation5 + $0x14] sm:$0xf]
    %v88 = vld [vmem:[#allocation5 + $0x18] sm:$0xf]
    %v89 = vld [vmem:[#allocation5 + $0x1c] sm:$0xf]
    %v90 = vld [vmem:[#allocation5 + $0x20] sm:$0xf]
    %v91 = vld [vmem:[#allocation5 + $0x24] sm:$0xf]
    %v92 = vld [vmem:[#allocation5 + $0x28] sm:$0xf]
    %v93 = vld [vmem:[#allocation5 + $0x2c] sm:$0xf]
    %v94 = vld [vmem:[#allocation5 + $0x30] sm:$0xf]
    %v95 = vld [vmem:[#allocation5 + $0x34] sm:$0xf]
    %v96 = vld [vmem:[#allocation5 + $0x38] sm:$0xf]
    %v97 = vld [vmem:[#allocation5 + $0x3c] sm:$0xf]
    %v98 = vld [vmem:[%s4] sm:$0x1]
    %v100 = vlaneseq
    %v101 = vshrl.u32 %v100, 7
    %v102 = vsub.s32 0, %v101
    %v103 = vrot.slane %v98, %v102
    %v121 = vunpack.c.l.b16 %v82
    %v122 = vunpack.c.l.b16 %v83
    %v123 = vunpack.c.l.b16 %v84
    %v124 = vunpack.c.l.b16 %v85
    %v125 = vunpack.c.l.b16 %v86
    %v126 = vunpack.c.l.b16 %v87
    %v127 = vunpack.c.l.b16 %v88
    %v128 = vunpack.c.l.b16 %v89
    %v129 = vunpack.c.l.b16 %v90
    %v130 = vunpack.c.l.b16 %v91
    %v131 = vunpack.c.l.b16 %v92
    %v132 = vunpack.c.l.b16 %v93
    %v133 = vunpack.c.l.b16 %v94
    %v134 = vunpack.c.l.b16 %v95
    %v135 = vunpack.c.l.b16 %v96
    %v136 = vunpack.c.l.b16 %v97
    %v137 = vpack.c.b16 %v122, %v121
    %v138 = vpack.c.b16 %v124, %v123
    %v139 = vpack.c.b16 %v126, %v125
    %v140 = vpack.c.b16 %v128, %v127
    %v141 = vpack.c.b16 %v130, %v129
    %v142 = vpack.c.b16 %v132, %v131
    %v143 = vpack.c.b16 %v134, %v133
    %v144 = vpack.c.b16 %v136, %v135
    %153 = vmatprep.subr.bf16.mxu0 0
    %154 = vmatpush1.bf16.msra.mxu0 %v137
    %155 = vmatprep.subr.bf16.mxu0 0
    %156 = vmatpush1.bf16.msra.mxu0 %v138
    %157 = vmatprep.subr.bf16.mxu0 0
    %158 = vmatpush1.bf16.msra.mxu0 %v139
    %159 = vmatprep.subr.bf16.mxu0 0
    %160 = vmatpush1.bf16.msra.mxu0 %v140
    %161 = vmatprep.subr.bf16.mxu0 0
    %162 = vmatpush1.bf16.msra.mxu0 %v141
    %163 = vmatprep.subr.bf16.mxu0 0
    %164 = vmatpush1.bf16.msra.mxu0 %v142
    %165 = vmatprep.subr.bf16.mxu0 0
    %166 = vmatpush1.bf16.msra.mxu0 %v143
    %167 = vmatprep.subr.bf16.mxu0 0
    %168 = vmatpush1.bf16.msra.mxu0 %v144
    %169 = vmatprep.subr.bf16.mxu0 0
    %170 = vmatpush1.bf16.msra.mxu0 0
    %171 = vmatprep.subr.bf16.mxu0 0
    %172 = vmatpush1.bf16.msra.mxu0 0
    %173 = vmatprep.subr.bf16.mxu0 0
    %174 = vmatpush1.bf16.msra.mxu0 0
    %175 = vmatprep.subr.bf16.mxu0 0
    %176 = vmatpush1.bf16.msra.mxu0 0
    %177 = vmatprep.subr.bf16.mxu0 0
    %178 = vmatpush1.bf16.msra.mxu0 0
    %179 = vmatprep.subr.bf16.mxu0 0
    %180 = vmatpush1.bf16.msra.mxu0 0
    %181 = vmatprep.subr.bf16.mxu0 0
    %182 = vmatpush1.bf16.msra.mxu0 0
    %183 = vmatprep.subr.bf16.mxu0 0
    %184 = vmatpush1.bf16.msra.mxu0 0
    %185 = vmatprep.mubr.bf16.mxu0 0
    %186 = vmatmul.mubr.bf16.gmra.mrb[0].mxu0 %v80
    %v187 = vpop.f32.mrb[0].mxu0
    %v188 = vadd.f32 %v103, %v187
    %v189 = vpop.f32.mrb[0].mxu0
    %v190 = vpop.f32.mrb[0].mxu0
    %v191 = vadd.f32 %v103, %v190
    %v192 = vpop.f32.mrb[0].mxu0
    %193 = vmatprep.mubr.bf16.mxu0 0
    %194 = vmatmul.mubr.bf16.gmra.mrb[0].mxu0 %v81
    %v195 = vpop.f32.mrb[0].mxu0
    %v196 = vadd.f32 %v103, %v195
    %v197 = vpop.f32.mrb[0].mxu0
    %v198 = vpop.f32.mrb[0].mxu0
    %v199 = vpop.f32.mrb[0].mxu0
    %200 = vdwg.mxu0
    %v201 = vpack.c.bf16 %v191, %v188
    %v202 = vpack.c.bf16 %v196, %v196
    %v203 = vmax.bf16 %v201, 0
    %v204 = vmax.bf16 %v202, 0
    %v205 = vld [vmem:[#allocation7] sm:$0xf]
    %v206 = vld [vmem:[#allocation7 + $0x4] sm:$0xf]
    %v207 = vld [vmem:[#allocation7 + $0x8] sm:$0xf]
    %v208 = vld [vmem:[#allocation7 + $0xc] sm:$0xf]
    %v209 = vld [vmem:[#allocation7 + $0x10] sm:$0xf]
    %v210 = vld [vmem:[#allocation7 + $0x14] sm:$0xf]
    %v211 = vld [vmem:[#allocation7 + $0x18] sm:$0xf]
    %v212 = vld [vmem:[#allocation7 + $0x1c] sm:$0xf]
    %v213 = vld [vmem:[#allocation7 + $0x20] sm:$0xf]
    %v214 = vld [vmem:[#allocation7 + $0x24] sm:$0xf]
    %v215 = vld [vmem:[#allocation7 + $0x28] sm:$0xf]
    %v216 = vld [vmem:[#allocation7 + $0x2c] sm:$0xf]
    %v217 = vld [vmem:[#allocation7 + $0x30] sm:$0xf]
    %v218 = vld [vmem:[#allocation7 + $0x34] sm:$0xf]
    %v219 = vld [vmem:[#allocation7 + $0x38] sm:$0xf]
    %v220 = vld [vmem:[#allocation7 + $0x3c] sm:$0xf]
    %v221 = vld [vmem:[%s4 + $0x1] sm:$0x1]
    %v223 = vlaneseq
    %v224 = vshrl.u32 %v223, 7
    %v225 = vsub.s32 0, %v224
    %v226 = vrot.slane %v221, %v225
    %v244 = vunpack.c.l.b16 %v205
    %v245 = vunpack.c.l.b16 %v206
    %v246 = vunpack.c.l.b16 %v207
    %v247 = vunpack.c.l.b16 %v208
    %v248 = vunpack.c.l.b16 %v209
    %v249 = vunpack.c.l.b16 %v210
    %v250 = vunpack.c.l.b16 %v211
    %v251 = vunpack.c.l.b16 %v212
    %v252 = vunpack.c.l.b16 %v213
    %v253 = vunpack.c.l.b16 %v214
    %v254 = vunpack.c.l.b16 %v215
    %v255 = vunpack.c.l.b16 %v216
    %v256 = vunpack.c.l.b16 %v217
    %v257 = vunpack.c.l.b16 %v218
    %v258 = vunpack.c.l.b16 %v219
    %v259 = vunpack.c.l.b16 %v220
    %v260 = vpack.c.b16 %v245, %v244
    %v261 = vpack.c.b16 %v247, %v246
    %v262 = vpack.c.b16 %v249, %v248
    %v263 = vpack.c.b16 %v251, %v250
    %v264 = vpack.c.b16 %v253, %v252
    %v265 = vpack.c.b16 %v255, %v254
    %v266 = vpack.c.b16 %v257, %v256
    %v267 = vpack.c.b16 %v259, %v258
    %276 = vmatprep.subr.bf16.mxu0 0
    %277 = vmatpush1.bf16.msra.mxu0 %v260
    %278 = vmatprep.subr.bf16.mxu0 0
    %279 = vmatpush1.bf16.msra.mxu0 %v261
    %280 = vmatprep.subr.bf16.mxu0 0
    %281 = vmatpush1.bf16.msra.mxu0 %v262
    %282 = vmatprep.subr.bf16.mxu0 0
    %283 = vmatpush1.bf16.msra.mxu0 %v263
    %284 = vmatprep.subr.bf16.mxu0 0
    %285 = vmatpush1.bf16.msra.mxu0 %v264
    %286 = vmatprep.subr.bf16.mxu0 0
    %287 = vmatpush1.bf16.msra.mxu0 %v265
    %288 = vmatprep.subr.bf16.mxu0 0
    %289 = vmatpush1.bf16.msra.mxu0 %v266
    %290 = vmatprep.subr.bf16.mxu0 0
    %291 = vmatpush1.bf16.msra.mxu0 %v267
    %292 = vmatprep.subr.bf16.mxu0 0
    %293 = vmatpush1.bf16.msra.mxu0 0
    %294 = vmatprep.subr.bf16.mxu0 0
    %295 = vmatpush1.bf16.msra.mxu0 0
    %296 = vmatprep.subr.bf16.mxu0 0
    %297 = vmatpush1.bf16.msra.mxu0 0
    %298 = vmatprep.subr.bf16.mxu0 0
    %299 = vmatpush1.bf16.msra.mxu0 0
    %300 = vmatprep.subr.bf16.mxu0 0
    %301 = vmatpush1.bf16.msra.mxu0 0
    %302 = vmatprep.subr.bf16.mxu0 0
    %303 = vmatpush1.bf16.msra.mxu0 0
    %304 = vmatprep.subr.bf16.mxu0 0
    %305 = vmatpush1.bf16.msra.mxu0 0
    %306 = vmatprep.subr.bf16.mxu0 0
    %307 = vmatpush1.bf16.msra.mxu0 0
    %308 = vmatprep.mubr.bf16.mxu0 0
    %309 = vmatmul.mubr.bf16.gmra.mrb[0].mxu0 %v203
    %v310 = vpop.f32.mrb[0].mxu0
    %v311 = vadd.f32 %v226, %v310
    %v312 = vpop.f32.mrb[0].mxu0
    %v313 = vpop.f32.mrb[0].mxu0
    %v314 = vadd.f32 %v226, %v313
    %v315 = vpop.f32.mrb[0].mxu0
    %316 = vmatprep.mubr.bf16.mxu0 0
    %317 = vmatmul.mubr.bf16.gmra.mrb[0].mxu0 %v204
    %v318 = vpop.f32.mrb[0].mxu0
    %v319 = vadd.f32 %v226, %v318
    %v320 = vpop.f32.mrb[0].mxu0
    %v321 = vpop.f32.mrb[0].mxu0
    %v322 = vpop.f32.mrb[0].mxu0
    %323 = vdwg.mxu0
    %v324 = vpack.c.bf16 %v314, %v311
    %v325 = vpack.c.bf16 %v319, %v319
    %v326 = vmax.bf16 %v324, 0
    %v327 = vmax.bf16 %v325, 0
    %v328 = vld [vmem:[#allocation8] sm:$0xf]
    %v329 = vld [vmem:[#allocation8 + $0x4] sm:$0xf]
    %v330 = vld [vmem:[#allocation8 + $0x8] sm:$0xf]
    %v331 = vld [vmem:[#allocation8 + $0xc] sm:$0xf]
    %v332 = vld [vmem:[#allocation8 + $0x10] sm:$0xf]
    %v333 = vld [vmem:[#allocation8 + $0x14] sm:$0xf]
    %v334 = vld [vmem:[#allocation8 + $0x18] sm:$0xf]
    %v335 = vld [vmem:[#allocation8 + $0x1c] sm:$0xf]
    %v336 = vld [vmem:[#allocation8 + $0x20] sm:$0xf]
    %v337 = vld [vmem:[#allocation8 + $0x24] sm:$0xf]
    %v338 = vld [vmem:[#allocation8 + $0x28] sm:$0xf]
    %v339 = vld [vmem:[#allocation8 + $0x2c] sm:$0xf]
    %v340 = vld [vmem:[#allocation8 + $0x30] sm:$0xf]
    %v341 = vld [vmem:[#allocation8 + $0x34] sm:$0xf]
    %v342 = vld [vmem:[#allocation8 + $0x38] sm:$0xf]
    %v343 = vld [vmem:[#allocation8 + $0x3c] sm:$0xf]
    %v344 = vld [vmem:[%s4 + $0x2] sm:$0x1]
    %v346 = vlaneseq
    %v347 = vshrl.u32 %v346, 7
    %v348 = vsub.s32 0, %v347
    %v349 = vrot.slane %v344, %v348
    %v367 = vunpack.c.l.b16 %v328
    %v368 = vunpack.c.l.b16 %v329
    %v369 = vunpack.c.l.b16 %v330
    %v370 = vunpack.c.l.b16 %v331
    %v371 = vunpack.c.l.b16 %v332
    %v372 = vunpack.c.l.b16 %v333
    %v373 = vunpack.c.l.b16 %v334
    %v374 = vunpack.c.l.b16 %v335
    %v375 = vunpack.c.l.b16 %v336
    %v376 = vunpack.c.l.b16 %v337
    %v377 = vunpack.c.l.b16 %v338
    %v378 = vunpack.c.l.b16 %v339
    %v379 = vunpack.c.l.b16 %v340
    %v380 = vunpack.c.l.b16 %v341
    %v381 = vunpack.c.l.b16 %v342
    %v382 = vunpack.c.l.b16 %v343
    %v383 = vpack.c.b16 %v368, %v367
    %v384 = vpack.c.b16 %v370, %v369
    %v385 = vpack.c.b16 %v372, %v371
    %v386 = vpack.c.b16 %v374, %v373
    %v387 = vpack.c.b16 %v376, %v375
    %v388 = vpack.c.b16 %v378, %v377
    %v389 = vpack.c.b16 %v380, %v379
    %v390 = vpack.c.b16 %v382, %v381
    %399 = vmatprep.subr.bf16.mxu0 0
    %400 = vmatpush1.bf16.msra.mxu0 %v383
    %401 = vmatprep.subr.bf16.mxu0 0
    %402 = vmatpush1.bf16.msra.mxu0 %v384
    %403 = vmatprep.subr.bf16.mxu0 0
    %404 = vmatpush1.bf16.msra.mxu0 %v385
    %405 = vmatprep.subr.bf16.mxu0 0
    %406 = vmatpush1.bf16.msra.mxu0 %v386
    %407 = vmatprep.subr.bf16.mxu0 0
    %408 = vmatpush1.bf16.msra.mxu0 %v387
    %409 = vmatprep.subr.bf16.mxu0 0
    %410 = vmatpush1.bf16.msra.mxu0 %v388
    %411 = vmatprep.subr.bf16.mxu0 0
    %412 = vmatpush1.bf16.msra.mxu0 %v389
    %413 = vmatprep.subr.bf16.mxu0 0
    %414 = vmatpush1.bf16.msra.mxu0 %v390
    %415 = vmatprep.subr.bf16.mxu0 0
    %416 = vmatpush1.bf16.msra.mxu0 0
    %417 = vmatprep.subr.bf16.mxu0 0
    %418 = vmatpush1.bf16.msra.mxu0 0
    %419 = vmatprep.subr.bf16.mxu0 0
    %420 = vmatpush1.bf16.msra.mxu0 0
    %421 = vmatprep.subr.bf16.mxu0 0
    %422 = vmatpush1.bf16.msra.mxu0 0
    %423 = vmatprep.subr.bf16.mxu0 0
    %424 = vmatpush1.bf16.msra.mxu0 0
    %425 = vmatprep.subr.bf16.mxu0 0
    %426 = vmatpush1.bf16.msra.mxu0 0
    %427 = vmatprep.subr.bf16.mxu0 0
    %428 = vmatpush1.bf16.msra.mxu0 0
    %429 = vmatprep.subr.bf16.mxu0 0
    %430 = vmatpush1.bf16.msra.mxu0 0
    %431 = vmatprep.mubr.bf16.mxu0 0
    %432 = vmatmul.mubr.bf16.gmra.mrb[0].mxu0 %v326
    %v433 = vpop.f32.mrb[0].mxu0
    %v434 = vadd.f32 %v349, %v433
    %v435 = vpop.f32.mrb[0].mxu0
    %v436 = vpop.f32.mrb[0].mxu0
    %v437 = vadd.f32 %v349, %v436
    %v438 = vpop.f32.mrb[0].mxu0
    %439 = vmatprep.mubr.bf16.mxu0 0
    %440 = vmatmul.mubr.bf16.gmra.mrb[0].mxu0 %v327
    %v441 = vpop.f32.mrb[0].mxu0
    %v442 = vadd.f32 %v349, %v441
    %v443 = vpop.f32.mrb[0].mxu0
    %v444 = vpop.f32.mrb[0].mxu0
    %v445 = vpop.f32.mrb[0].mxu0
    %446 = vdwg.mxu0
    %v447 = vadd.f32 %v77, %v434
    %v448 = vadd.f32 %v78, %v437
    %v449 = vadd.f32 %v79, %v442
    %450 = vst [vmem:[#allocation10] sm:$0xff] %v447
    %451 = vst [vmem:[#allocation10 + $0x8] sm:$0xff] %v448
    %452 = vst [vmem:[#allocation10 + $0x10] sm:$0xff] %v449
    // Predicated region
    $region38: #{tpu_custom_call.1} parent=1 // pred_check
      _
    $region39: #{tpu_custom_call.1} parent=1 // pred_check_branch
      %454 = sbr.rel (0) target = $region41
    $region40: #{tpu_custom_call.1} parent=1 // pred_region
      %s456 = ssub.s32 384, 384
      %457 = vsyncadd [#allocation4], %s456
      %s458 = sshll.u32 [#allocation10], 4
      %s459 = int_to_ptr.vmem [resolvable:$true] %s458
      %464 = dma.vmem_to_hbm [thread:$0]  %s459, 384, %s5, [#allocation4], 128, 128, 8
    $region41: #{tpu_custom_call.1} parent=1 // pred_fallthru
      _
    // Predicated region
    $region42: #{tpu_custom_call.1} parent=1 // pred_check
      _
    $region43: #{tpu_custom_call.1} parent=1 // pred_check_branch
      %466 = sbr.rel (0) target = $region45
    $region44: #{tpu_custom_call.1} parent=1 // pred_region
      %467 = dma.done [#allocation4], 384
    $region45: #{tpu_custom_call.1} parent=1 // pred_fallthru
      _
    %468 = vsyncpa [#allocation3], 1
    %469 = vsyncpa [#allocation6], 1
    %470 = vsyncpa [#allocation9], 1
    %471 = vsyncpa [#allocation4], 1

// kernel: tpu_custom_call.1
$region0: #{tpu_custom_call.1}
  #allocation0 [shape = 'u32[]', space=smem, size = 0x4, offset = 0x4, fixed_abs, tag = 'smem constant byte address 0x4 - core index']
  #allocation1 [shape = 'u32[144,128]{1,0:T(1,128)}', space=vmem, size = 0x12000, scoped, tag = 'internal scratch']
  %s0 = inlined_call_operand.hbm [shape: f32[24,128], index: 0, kind: input, shape index: {}]
  %s1 = inlined_call_operand.hbm [shape: bf16[128,128], index: 1, kind: input, shape index: {}]
  %s2 = inlined_call_operand.hbm [shape: bf16[128,128], index: 2, kind: input, shape index: {}]
  %s3 = inlined_call_operand.hbm [shape: bf16[128,128], index: 3, kind: input, shape index: {}]
  %s4 = inlined_call_operand.vmem [shape: f32[1,384], index: 4, kind: input, shape index: {}]
  %s5 = inlined_call_operand.hbm [shape: f32[24,128], index: 5, kind: output, shape index: {}]
  %s6 = sld [smem:[#allocation0]]
  $region46: #{tpu_custom_call.1} parent=0
    _
  %s8 = ssub.s32 1, %s6
  %s9 = scalar_select 0, %s8, %s6
  $region1: #{tpu_custom_call.1} parent=0
    #allocation2 [shape = 'u8[12288]{0}', space=vmem, size = 0x3000, scoped, tag = 'input window, operand 0, single buffered']
    #allocation3 [shape = 's32[1]{0}', space=sflag, size = 0x4, scoped, tag = 'scoped memory for tpu_custom_call.1']
    #allocation4 [shape = 's32[1]{0}', space=sflag, size = 0x4, scoped, tag = 'scoped memory for tpu_custom_call.1']
    #allocation5 [shape = 'u8[32768]{0}', space=vmem, size = 0x8000, scoped, tag = 'input window, operand 1, single buffered']
    #allocation6 [shape = 's32[1]{0}', space=sflag, size = 0x4, scoped, tag = 'scoped memory for tpu_custom_call.1']
    #allocation7 [shape = 'u8[32768]{0}', space=vmem, size = 0x8000, scoped, tag = 'input window, operand 2, single buffered']
    #allocation8 [shape = 'u8[32768]{0}', space=vmem, size = 0x8000, scoped, tag = 'input window, operand 3, single buffered']
    #allocation9 [shape = 's32[1]{0}', space=sflag, size = 0x4, scoped, tag = 'scoped memory for tpu_custom_call.1']
    #allocation10 [shape = 'u8[12288]{0}', space=vmem, size = 0x3000, scoped, tag = 'output window, operand 0, single buffered']
    %10 = vsyncpa [#allocation3], 0
    %11 = vsyncpa [#allocation6], 0
    %12 = vsyncpa [#allocation9], 0
    %13 = vsyncpa [#allocation4], 0
    // Predicated region
    $region2: #{tpu_custom_call.1} parent=1 // pred_check
      _
    $region3: #{tpu_custom_call.1} parent=1 // pred_check_branch
      %15 = sbr.rel (0) target = $region5
    $region4: #{tpu_custom_call.1} parent=1 // pred_region
      %s17 = ssub.s32 384, 384
      %18 = vsyncadd [#allocation3], %s17
      %s19 = sshll.u32 [#allocation2], 4
      %s20 = int_to_ptr.vmem [resolvable:$true] %s19
      %25 = dma.hbm_to_vmem [thread:$0]  %s0, 384, %s20, [#allocation3], 128, 128, 8
    $region5: #{tpu_custom_call.1} parent=1 // pred_fallthru
      _
    // Predicated region
    $region6: #{tpu_custom_call.1} parent=1 // pred_check
      _
    $region7: #{tpu_custom_call.1} parent=1 // pred_check_branch
      %27 = sbr.rel (0) target = $region9
    $region8: #{tpu_custom_call.1} parent=1 // pred_region
      %s29 = ssub.s32 1024, 1024
      %30 = vsyncadd [#allocation6], %s29
      %s31 = sshll.u32 [#allocation5], 4
      %s32 = int_to_ptr.vmem [resolvable:$true] %s31
      %37 = dma.hbm_to_vmem [thread:$0]  %s1, 1024, %s32, [#allocation6], 64, 64, 4
    $region9: #{tpu_custom_call.1} parent=1 // pred_fallthru
      _
    // Predicated region
    $region10: #{tpu_custom_call.1} parent=1 // pred_check
      _
    $region11: #{tpu_custom_call.1} parent=1 // pred_check_branch
      %39 = sbr.rel (0) target = $region13
    $region12: #{tpu_custom_call.1} parent=1 // pred_region
      %s41 = ssub.s32 1024, 1024
      %42 = vsyncadd [#allocation6], %s41
      %s43 = sshll.u32 [#allocation7], 4
      %s44 = int_to_ptr.vmem [resolvable:$true] %s43
      %49 = dma.hbm_to_vmem [thread:$0]  %s2, 1024, %s44, [#allocation6], 64, 64, 4
    $region13: #{tpu_custom_call.1} parent=1 // pred_fallthru
      _
    // Predicated region
    $region14: #{tpu_custom_call.1} parent=1 // pred_check
      _
    $region15: #{tpu_custom_call.1} parent=1 // pred_check_branch
      %51 = sbr.rel (0) target = $region17
    $region16: #{tpu_custom_call.1} parent=1 // pred_region
      %s53 = ssub.s32 1024, 1024
      %54 = vsyncadd [#allocation9], %s53
      %s55 = sshll.u32 [#allocation8], 4
      %s56 = int_to_ptr.vmem [resolvable:$true] %s55
      %61 = dma.hbm_to_vmem [thread:$0]  %s3, 1024, %s56, [#allocation9], 64, 64, 4
    $region17: #{tpu_custom_call.1} parent=1 // pred_fallthru
      _
    // Predicated region
    $region18: #{tpu_custom_call.1} parent=1 // pred_check
      _
    $region19: #{tpu_custom_call.1} parent=1 // pred_check_branch
      %63 = sbr.rel (0) target = $region21
    $region20: #{tpu_custom_call.1} parent=1 // pred_region
      _
    $region21: #{tpu_custom_call.1} parent=1 // pred_fallthru
      _
    // Predicated region
    $region22: #{tpu_custom_call.1} parent=1 // pred_check
      _
    $region23: #{tpu_custom_call.1} parent=1 // pred_check_branch
      %65 = sbr.rel (0) target = $region25
    $region24: #{tpu_custom_call.1} parent=1 // pred_region
      %66 = dma.done [#allocation3], 384
    $region25: #{tpu_custom_call.1} parent=1 // pred_fallthru
      _
    // Predicated region
    $region26: #{tpu_custom_call.1} parent=1 // pred_check
      _
    $region27: #{tpu_custom_call.1} parent=1 // pred_check_branch
      %68 = sbr.rel (0) target = $region29
    $region28: #{tpu_custom_call.1} parent=1 // pred_region
      %69 = dma.done [#allocation6], 1024
    $region29: #{tpu_custom_call.1} parent=1 // pred_fallthru
      _
    // Predicated region
    $region30: #{tpu_custom_call.1} parent=1 // pred_check
      _
    $region31: #{tpu_custom_call.1} parent=1 // pred_check_branch
      %71 = sbr.rel (0) target = $region33
    $region32: #{tpu_custom_call.1} parent=1 // pred_region
      %72 = dma.done [#allocation6], 1024
    $region33: #{tpu_custom_call.1} parent=1 // pred_fallthru
      _
    // Predicated region
    $region34: #{tpu_custom_call.1} parent=1 // pred_check
      _
    $region35: #{tpu_custom_call.1} parent=1 // pred_check_branch
      %74 = sbr.rel (0) target = $region37
    $region36: #{tpu_custom_call.1} parent=1 // pred_region
      %75 = dma.done [#allocation9], 1024
    $region37: #{tpu_custom_call.1} parent=1 // pred_fallthru
      _
    %v77 = vld [vmem:[#allocation2] sm:$0xff]
    %v78 = vld [vmem:[#allocation2 + $0x8] sm:$0xff]
    %v79 = vld [vmem:[#allocation2 + $0x10] sm:$0xff]
    %v80 = vpack.c.bf16 %v78, %v77
    %v81 = vpack.c.bf16 %v79, %v79
    %v82 = vld [vmem:[#allocation5] sm:$0xf]
    %v83 = vld [vmem:[#allocation5 + $0x4] sm:$0xf]
    %v84 = vld [vmem:[#allocation5 + $0x8] sm:$0xf]
    %v85 = vld [vmem:[#allocation5 + $0xc] sm:$0xf]
    %v86 = vld [vmem:[#allocation5 + $0x10] sm:$0xf]
    %v87 = vld [vmem:[#allocation5 + $0x14] sm:$0xf]
    %v88 = vld [vmem:[#allocation5 + $0x18] sm:$0xf]
    %v89 = vld [vmem:[#allocation5 + $0x1c] sm:$0xf]
    %v90 = vld [vmem:[#allocation5 + $0x20] sm:$0xf]
    %v91 = vld [vmem:[#allocation5 + $0x24] sm:$0xf]
    %v92 = vld [vmem:[#allocation5 + $0x28] sm:$0xf]
    %v93 = vld [vmem:[#allocation5 + $0x2c] sm:$0xf]
    %v94 = vld [vmem:[#allocation5 + $0x30] sm:$0xf]
    %v95 = vld [vmem:[#allocation5 + $0x34] sm:$0xf]
    %v96 = vld [vmem:[#allocation5 + $0x38] sm:$0xf]
    %v97 = vld [vmem:[#allocation5 + $0x3c] sm:$0xf]
    %v98 = vld [vmem:[%s4] sm:$0x1]
    %v100 = vlaneseq
    %v101 = vshrl.u32 %v100, 7
    %v102 = vsub.s32 0, %v101
    %v103 = vrot.slane %v98, %v102
    %v121 = vunpack.c.l.b16 %v82
    %v122 = vunpack.c.l.b16 %v83
    %v123 = vunpack.c.l.b16 %v84
    %v124 = vunpack.c.l.b16 %v85
    %v125 = vunpack.c.l.b16 %v86
    %v126 = vunpack.c.l.b16 %v87
    %v127 = vunpack.c.l.b16 %v88
    %v128 = vunpack.c.l.b16 %v89
    %v129 = vunpack.c.l.b16 %v90
    %v130 = vunpack.c.l.b16 %v91
    %v131 = vunpack.c.l.b16 %v92
    %v132 = vunpack.c.l.b16 %v93
    %v133 = vunpack.c.l.b16 %v94
    %v134 = vunpack.c.l.b16 %v95
    %v135 = vunpack.c.l.b16 %v96
    %v136 = vunpack.c.l.b16 %v97
    %v137 = vpack.c.b16 %v122, %v121
    %v138 = vpack.c.b16 %v124, %v123
    %v139 = vpack.c.b16 %v126, %v125
    %v140 = vpack.c.b16 %v128, %v127
    %v141 = vpack.c.b16 %v130, %v129
    %v142 = vpack.c.b16 %v132, %v131
    %v143 = vpack.c.b16 %v134, %v133
    %v144 = vpack.c.b16 %v136, %v135
    %153 = vmatprep.subr.bf16.mxu0 0
    %154 = vmatpush1.bf16.msra.mxu0 %v137
    %155 = vmatprep.subr.bf16.mxu0 0
    %156 = vmatpush1.bf16.msra.mxu0 %v138
    %157 = vmatprep.subr.bf16.mxu0 0
    %158 = vmatpush1.bf16.msra.mxu0 %v139
    %159 = vmatprep.subr.bf16.mxu0 0
    %160 = vmatpush1.bf16.msra.mxu0 %v140
    %161 = vmatprep.subr.bf16.mxu0 0
    %162 = vmatpush1.bf16.msra.mxu0 %v141
    %163 = vmatprep.subr.bf16.mxu0 0
    %164 = vmatpush1.bf16.msra.mxu0 %v142
    %165 = vmatprep.subr.bf16.mxu0 0
    %166 = vmatpush1.bf16.msra.mxu0 %v143
    %167 = vmatprep.subr.bf16.mxu0 0
    %168 = vmatpush1.bf16.msra.mxu0 %v144
    %169 = vmatprep.subr.bf16.mxu0 0
    %170 = vmatpush1.bf16.msra.mxu0 0
    %171 = vmatprep.subr.bf16.mxu0 0
    %172 = vmatpush1.bf16.msra.mxu0 0
    %173 = vmatprep.subr.bf16.mxu0 0
    %174 = vmatpush1.bf16.msra.mxu0 0
    %175 = vmatprep.subr.bf16.mxu0 0
    %176 = vmatpush1.bf16.msra.mxu0 0
    %177 = vmatprep.subr.bf16.mxu0 0
    %178 = vmatpush1.bf16.msra.mxu0 0
    %179 = vmatprep.subr.bf16.mxu0 0
    %180 = vmatpush1.bf16.msra.mxu0 0
    %181 = vmatprep.subr.bf16.mxu0 0
    %182 = vmatpush1.bf16.msra.mxu0 0
    %183 = vmatprep.subr.bf16.mxu0 0
    %184 = vmatpush1.bf16.msra.mxu0 0
    %185 = vmatprep.mubr.bf16.mxu0 0
    %186 = vmatmul.mubr.bf16.gmra.mrb[0].mxu0 %v80
    %v187 = vpop.f32.mrb[0].mxu0
    %v188 = vadd.f32 %v103, %v187
    %v189 = vpop.f32.mrb[0].mxu0
    %v190 = vpop.f32.mrb[0].mxu0
    %v191 = vadd.f32 %v103, %v190
    %v192 = vpop.f32.mrb[0].mxu0
    %193 = vmatprep.mubr.bf16.mxu0 0
    %194 = vmatmul.mubr.bf16.gmra.mrb[0].mxu0 %v81
    %v195 = vpop.f32.mrb[0].mxu0
    %v196 = vadd.f32 %v103, %v195
    %v197 = vpop.f32.mrb[0].mxu0
    %v198 = vpop.f32.mrb[0].mxu0
    %v199 = vpop.f32.mrb[0].mxu0
    %200 = vdwg.mxu0
    %v201 = vpack.c.bf16 %v191, %v188
    %v202 = vpack.c.bf16 %v196, %v196
    %v203 = vmax.bf16 %v201, 0
    %v204 = vmax.bf16 %v202, 0
    %v205 = vld [vmem:[#allocation7] sm:$0xf]
    %v206 = vld [vmem:[#allocation7 + $0x4] sm:$0xf]
    %v207 = vld [vmem:[#allocation7 + $0x8] sm:$0xf]
    %v208 = vld [vmem:[#allocation7 + $0xc] sm:$0xf]
    %v209 = vld [vmem:[#allocation7 + $0x10] sm:$0xf]
    %v210 = vld [vmem:[#allocation7 + $0x14] sm:$0xf]
    %v211 = vld [vmem:[#allocation7 + $0x18] sm:$0xf]
    %v212 = vld [vmem:[#allocation7 + $0x1c] sm:$0xf]
    %v213 = vld [vmem:[#allocation7 + $0x20] sm:$0xf]
    %v214 = vld [vmem:[#allocation7 + $0x24] sm:$0xf]
    %v215 = vld [vmem:[#allocation7 + $0x28] sm:$0xf]
    %v216 = vld [vmem:[#allocation7 + $0x2c] sm:$0xf]
    %v217 = vld [vmem:[#allocation7 + $0x30] sm:$0xf]
    %v218 = vld [vmem:[#allocation7 + $0x34] sm:$0xf]
    %v219 = vld [vmem:[#allocation7 + $0x38] sm:$0xf]
    %v220 = vld [vmem:[#allocation7 + $0x3c] sm:$0xf]
    %v221 = vld [vmem:[%s4 + $0x1] sm:$0x1]
    %v223 = vlaneseq
    %v224 = vshrl.u32 %v223, 7
    %v225 = vsub.s32 0, %v224
    %v226 = vrot.slane %v221, %v225
    %v244 = vunpack.c.l.b16 %v205
    %v245 = vunpack.c.l.b16 %v206
    %v246 = vunpack.c.l.b16 %v207
    %v247 = vunpack.c.l.b16 %v208
    %v248 = vunpack.c.l.b16 %v209
    %v249 = vunpack.c.l.b16 %v210
    %v250 = vunpack.c.l.b16 %v211
    %v251 = vunpack.c.l.b16 %v212
    %v252 = vunpack.c.l.b16 %v213
    %v253 = vunpack.c.l.b16 %v214
    %v254 = vunpack.c.l.b16 %v215
    %v255 = vunpack.c.l.b16 %v216
    %v256 = vunpack.c.l.b16 %v217
    %v257 = vunpack.c.l.b16 %v218
    %v258 = vunpack.c.l.b16 %v219
    %v259 = vunpack.c.l.b16 %v220
    %v260 = vpack.c.b16 %v245, %v244
    %v261 = vpack.c.b16 %v247, %v246
    %v262 = vpack.c.b16 %v249, %v248
    %v263 = vpack.c.b16 %v251, %v250
    %v264 = vpack.c.b16 %v253, %v252
    %v265 = vpack.c.b16 %v255, %v254
    %v266 = vpack.c.b16 %v257, %v256
    %v267 = vpack.c.b16 %v259, %v258
    %276 = vmatprep.subr.bf16.mxu0 0
    %277 = vmatpush1.bf16.msra.mxu0 %v260
    %278 = vmatprep.subr.bf16.mxu0 0
    %279 = vmatpush1.bf16.msra.mxu0 %v261
    %280 = vmatprep.subr.bf16.mxu0 0
    %281 = vmatpush1.bf16.msra.mxu0 %v262
    %282 = vmatprep.subr.bf16.mxu0 0
    %283 = vmatpush1.bf16.msra.mxu0 %v263
    %284 = vmatprep.subr.bf16.mxu0 0
    %285 = vmatpush1.bf16.msra.mxu0 %v264
    %286 = vmatprep.subr.bf16.mxu0 0
    %287 = vmatpush1.bf16.msra.mxu0 %v265
    %288 = vmatprep.subr.bf16.mxu0 0
    %289 = vmatpush1.bf16.msra.mxu0 %v266
    %290 = vmatprep.subr.bf16.mxu0 0
    %291 = vmatpush1.bf16.msra.mxu0 %v267
    %292 = vmatprep.subr.bf16.mxu0 0
    %293 = vmatpush1.bf16.msra.mxu0 0
    %294 = vmatprep.subr.bf16.mxu0 0
    %295 = vmatpush1.bf16.msra.mxu0 0
    %296 = vmatprep.subr.bf16.mxu0 0
    %297 = vmatpush1.bf16.msra.mxu0 0
    %298 = vmatprep.subr.bf16.mxu0 0
    %299 = vmatpush1.bf16.msra.mxu0 0
    %300 = vmatprep.subr.bf16.mxu0 0
    %301 = vmatpush1.bf16.msra.mxu0 0
    %302 = vmatprep.subr.bf16.mxu0 0
    %303 = vmatpush1.bf16.msra.mxu0 0
    %304 = vmatprep.subr.bf16.mxu0 0
    %305 = vmatpush1.bf16.msra.mxu0 0
    %306 = vmatprep.subr.bf16.mxu0 0
    %307 = vmatpush1.bf16.msra.mxu0 0
    %308 = vmatprep.mubr.bf16.mxu0 0
    %309 = vmatmul.mubr.bf16.gmra.mrb[0].mxu0 %v203
    %v310 = vpop.f32.mrb[0].mxu0
    %v311 = vadd.f32 %v226, %v310
    %v312 = vpop.f32.mrb[0].mxu0
    %v313 = vpop.f32.mrb[0].mxu0
    %v314 = vadd.f32 %v226, %v313
    %v315 = vpop.f32.mrb[0].mxu0
    %316 = vmatprep.mubr.bf16.mxu0 0
    %317 = vmatmul.mubr.bf16.gmra.mrb[0].mxu0 %v204
    %v318 = vpop.f32.mrb[0].mxu0
    %v319 = vadd.f32 %v226, %v318
    %v320 = vpop.f32.mrb[0].mxu0
    %v321 = vpop.f32.mrb[0].mxu0
    %v322 = vpop.f32.mrb[0].mxu0
    %323 = vdwg.mxu0
    %v324 = vpack.c.bf16 %v314, %v311
    %v325 = vpack.c.bf16 %v319, %v319
    %v326 = vmax.bf16 %v324, 0
    %v327 = vmax.bf16 %v325, 0
    %v328 = vld [vmem:[#allocation8] sm:$0xf]
    %v329 = vld [vmem:[#allocation8 + $0x4] sm:$0xf]
    %v330 = vld [vmem:[#allocation8 + $0x8] sm:$0xf]
    %v331 = vld [vmem:[#allocation8 + $0xc] sm:$0xf]
    %v332 = vld [vmem:[#allocation8 + $0x10] sm:$0xf]
    %v333 = vld [vmem:[#allocation8 + $0x14] sm:$0xf]
    %v334 = vld [vmem:[#allocation8 + $0x18] sm:$0xf]
    %v335 = vld [vmem:[#allocation8 + $0x1c] sm:$0xf]
    %v336 = vld [vmem:[#allocation8 + $0x20] sm:$0xf]
    %v337 = vld [vmem:[#allocation8 + $0x24] sm:$0xf]
    %v338 = vld [vmem:[#allocation8 + $0x28] sm:$0xf]
    %v339 = vld [vmem:[#allocation8 + $0x2c] sm:$0xf]
    %v340 = vld [vmem:[#allocation8 + $0x30] sm:$0xf]
    %v341 = vld [vmem:[#allocation8 + $0x34] sm:$0xf]
    %v342 = vld [vmem:[#allocation8 + $0x38] sm:$0xf]
    %v343 = vld [vmem:[#allocation8 + $0x3c] sm:$0xf]
    %v344 = vld [vmem:[%s4 + $0x2] sm:$0x1]
    %v346 = vlaneseq
    %v347 = vshrl.u32 %v346, 7
    %v348 = vsub.s32 0, %v347
    %v349 = vrot.slane %v344, %v348
    %v367 = vunpack.c.l.b16 %v328
    %v368 = vunpack.c.l.b16 %v329
    %v369 = vunpack.c.l.b16 %v330
    %v370 = vunpack.c.l.b16 %v331
    %v371 = vunpack.c.l.b16 %v332
    %v372 = vunpack.c.l.b16 %v333
    %v373 = vunpack.c.l.b16 %v334
    %v374 = vunpack.c.l.b16 %v335
    %v375 = vunpack.c.l.b16 %v336
    %v376 = vunpack.c.l.b16 %v337
    %v377 = vunpack.c.l.b16 %v338
    %v378 = vunpack.c.l.b16 %v339
    %v379 = vunpack.c.l.b16 %v340
    %v380 = vunpack.c.l.b16 %v341
    %v381 = vunpack.c.l.b16 %v342
    %v382 = vunpack.c.l.b16 %v343
    %v383 = vpack.c.b16 %v368, %v367
    %v384 = vpack.c.b16 %v370, %v369
    %v385 = vpack.c.b16 %v372, %v371
    %v386 = vpack.c.b16 %v374, %v373
    %v387 = vpack.c.b16 %v376, %v375
    %v388 = vpack.c.b16 %v378, %v377
    %v389 = vpack.c.b16 %v380, %v379
    %v390 = vpack.c.b16 %v382, %v381
    %399 = vmatprep.subr.bf16.mxu0 0
    %400 = vmatpush1.bf16.msra.mxu0 %v383
    %401 = vmatprep.subr.bf16.mxu0 0
    %402 = vmatpush1.bf16.msra.mxu0 %v384
    %403 = vmatprep.subr.bf16.mxu0 0
    %404 = vmatpush1.bf16.msra.mxu0 %v385
    %405 = vmatprep.subr.bf16.mxu0 0
    %406 = vmatpush1.bf16.msra.mxu0 %v386
    %407 = vmatprep.subr.bf16.mxu0 0
    %408 = vmatpush1.bf16.msra.mxu0 %v387
    %409 = vmatprep.subr.bf16.mxu0 0
    %410 = vmatpush1.bf16.msra.mxu0 %v388
    %411 = vmatprep.subr.bf16.mxu0 0
    %412 = vmatpush1.bf16.msra.mxu0 %v389
    %413 = vmatprep.subr.bf16.mxu0 0
    %414 = vmatpush1.bf16.msra.mxu0 %v390
    %415 = vmatprep.subr.bf16.mxu0 0
    %416 = vmatpush1.bf16.msra.mxu0 0
    %417 = vmatprep.subr.bf16.mxu0 0
    %418 = vmatpush1.bf16.msra.mxu0 0
    %419 = vmatprep.subr.bf16.mxu0 0
    %420 = vmatpush1.bf16.msra.mxu0 0
    %421 = vmatprep.subr.bf16.mxu0 0
    %422 = vmatpush1.bf16.msra.mxu0 0
    %423 = vmatprep.subr.bf16.mxu0 0
    %424 = vmatpush1.bf16.msra.mxu0 0
    %425 = vmatprep.subr.bf16.mxu0 0
    %426 = vmatpush1.bf16.msra.mxu0 0
    %427 = vmatprep.subr.bf16.mxu0 0
    %428 = vmatpush1.bf16.msra.mxu0 0
    %429 = vmatprep.subr.bf16.mxu0 0
    %430 = vmatpush1.bf16.msra.mxu0 0
    %431 = vmatprep.mubr.bf16.mxu0 0
    %432 = vmatmul.mubr.bf16.gmra.mrb[0].mxu0 %v326
    %v433 = vpop.f32.mrb[0].mxu0
    %v434 = vadd.f32 %v349, %v433
    %v435 = vpop.f32.mrb[0].mxu0
    %v436 = vpop.f32.mrb[0].mxu0
    %v437 = vadd.f32 %v349, %v436
    %v438 = vpop.f32.mrb[0].mxu0
    %439 = vmatprep.mubr.bf16.mxu0 0
    %440 = vmatmul.mubr.bf16.gmra.mrb[0].mxu0 %v327
    %v441 = vpop.f32.mrb[0].mxu0
    %v442 = vadd.f32 %v349, %v441
    %v443 = vpop.f32.mrb[0].mxu0
    %v444 = vpop.f32.mrb[0].mxu0
    %v445 = vpop.f32.mrb[0].mxu0
    %446 = vdwg.mxu0
    %v447 = vadd.f32 %v77, %v434
    %v448 = vadd.f32 %v78, %v437
    %v449 = vadd.f32 %v79, %v442
    %450 = vst [vmem:[#allocation10] sm:$0xff] %v447
    %451 = vst [vmem:[#allocation10 + $0x8] sm:$0xff] %v448
    %452 = vst [vmem:[#allocation10 + $0x10] sm:$0xff] %v449
    // Predicated region
    $region38: #{tpu_custom_call.1} parent=1 // pred_check
      _
    $region39: #{tpu_custom_call.1} parent=1 // pred_check_branch
      %454 = sbr.rel (0) target = $region41
    $region40: #{tpu_custom_call.1} parent=1 // pred_region
      %s456 = ssub.s32 384, 384
      %457 = vsyncadd [#allocation4], %s456
      %s458 = sshll.u32 [#allocation10], 4
      %s459 = int_to_ptr.vmem [resolvable:$true] %s458
      %464 = dma.vmem_to_hbm [thread:$0]  %s459, 384, %s5, [#allocation4], 128, 128, 8
    $region41: #{tpu_custom_call.1} parent=1 // pred_fallthru
      _
    // Predicated region
    $region42: #{tpu_custom_call.1} parent=1 // pred_check
      _
    $region43: #{tpu_custom_call.1} parent=1 // pred_check_branch
      %466 = sbr.rel (0) target = $region45
    $region44: #{tpu_custom_call.1} parent=1 // pred_region
      %467 = dma.done [#allocation4], 384
    $region45: #{tpu_custom_call.1} parent=1 // pred_fallthru
      _
    %468 = vsyncpa [#allocation3], 1
    %469 = vsyncpa [#allocation6], 1
    %470 = vsyncpa [#allocation9], 1
    %471 = vsyncpa [#allocation4], 1

</llo_original>
